<compile_context>
chip_gen: v6e
topology: v6e:2x2x1
jax: 0.10.0
libtpu: 0.0.40
codegen_flags: <defaults>
</compile_context>

<pallas_src>
import functools

import jax
import jax.numpy as jnp
from jax.experimental import pallas as pl
from jax.experimental.pallas import tpu as pltpu

_SUB = 8            # sublane tile
_LANE = 128         # lane tile
_MAX_BLOCK_ROWS = 1024   # 1024 x 128 f32 = 512 KiB per input per step


def _bounded_mse_kernel(p_ref, t_ref, mse_out_ref, pen_out_ref,
                        acc_mse_ref, acc_pen_ref,
                        *, n, block_rows, min_val, max_val):
    i = pl.program_id(0)            # parallel slice
    j = pl.program_id(1)            # reduction step within the slice
    n_inner = pl.num_programs(1)

    @pl.when(j == 0)
    def _():
        acc_mse_ref[...] = jnp.zeros_like(acc_mse_ref)
        acc_pen_ref[...] = jnp.zeros_like(acc_pen_ref)

    p = p_ref[...].astype(jnp.float32)
    t = t_ref[...].astype(jnp.float32)

    # Mask out elements past the true length n (padding contributes zero).
    start = (i * n_inner + j) * (block_rows * _LANE)
    row = jax.lax.broadcasted_iota(jnp.int32, (block_rows, _LANE), 0)
    lane = jax.lax.broadcasted_iota(jnp.int32, (block_rows, _LANE), 1)
    valid = (start + row * _LANE + lane) < n
    m = valid.astype(jnp.float32)

    diff = p - t
    over = jnp.maximum(p - max_val, 0.0)
    under = jnp.maximum(min_val - p, 0.0)

    # Pure element-wise (VPU) accumulation; no cross-lane work in the loop.
    acc_mse_ref[...] += m * (diff * diff)
    acc_pen_ref[...] += m * (over * over + under * under)

    @pl.when(j == n_inner - 1)
    def _():
        mse_sum = jnp.sum(acc_mse_ref[...])
        pen_sum = jnp.sum(acc_pen_ref[...])
        mse_out_ref[...] = jnp.full((1, _SUB, _LANE), mse_sum, jnp.float32)
        pen_out_ref[...] = jnp.full((1, _SUB, _LANE), pen_sum, jnp.float32)


def bounded_mse_loss(preds, target, min_val=0.0, max_val=1.0, penalty=10.0):
    assert preds.shape == target.shape
    n = preds.size

    # Keep native dtype; cast to f32 inside the kernel (in-register).
    p = preds.reshape(-1)
    t = target.reshape(-1)

    rows_needed = pl.cdiv(n, _LANE)
    block_rows = min(_MAX_BLOCK_ROWS,
                     ((rows_needed + _SUB - 1) // _SUB) * _SUB)
    padded_rows = pl.cdiv(rows_needed, block_rows) * block_rows
    padded_n = padded_rows * _LANE
    pad = padded_n - n
    if pad:
        # Pad values are irrelevant: the kernel masks idx >= n.
        p = jnp.pad(p, (0, pad))
        t = jnp.pad(t, (0, pad))
    p2 = p.reshape(padded_rows, _LANE)
    t2 = t.reshape(padded_rows, _LANE)

    n_blocks = padded_rows // block_rows
    # 2 parallel slices (v7x megacore); fall back to 1 when it doesn't divide.
    n_par = 2 if (n_blocks >= 2 and n_blocks % 2 == 0) else 1
    n_inner = n_blocks // n_par

    kernel = functools.partial(
        _bounded_mse_kernel,
        n=int(n),
        block_rows=int(block_rows),
        min_val=float(min_val),
        max_val=float(max_val),
    )

    mse_part, pen_part = pl.pallas_call(
        kernel,
        out_shape=(
            jax.ShapeDtypeStruct((n_par, _SUB, _LANE), jnp.float32),
            jax.ShapeDtypeStruct((n_par, _SUB, _LANE), jnp.float32),
        ),
        grid_spec=pltpu.PrefetchScalarGridSpec(
            num_scalar_prefetch=0,
            grid=(n_par, n_inner),
            in_specs=[
                pl.BlockSpec((block_rows, _LANE),
                             lambda i, j: (i * n_inner + j, 0)),
                pl.BlockSpec((block_rows, _LANE),
                             lambda i, j: (i * n_inner + j, 0)),
            ],
            out_specs=[
                pl.BlockSpec((1, _SUB, _LANE), lambda i, j: (i, 0, 0)),
                pl.BlockSpec((1, _SUB, _LANE), lambda i, j: (i, 0, 0)),
            ],
            scratch_shapes=[
                pltpu.VMEM((block_rows, _LANE), jnp.float32),
                pltpu.VMEM((block_rows, _LANE), jnp.float32),
            ],
        ),
        compiler_params=pltpu.CompilerParams(
            dimension_semantics=("parallel", "arbitrary")),
    )(p2, t2)

    mse_sum = jnp.sum(mse_part[:, 0, 0])
    pen_sum = jnp.sum(pen_part[:, 0, 0])
    return (mse_sum + jnp.float32(penalty) * pen_sum) / jnp.float32(n)


def _reference(preds, target, min_val=0.0, max_val=1.0, penalty=10.0):
    p = preds.astype(jnp.float32)
    t = target.astype(jnp.float32)
    mse = jnp.mean((p - t) ** 2)
    over = jnp.maximum(p - max_val, 0.0)
    under = jnp.maximum(min_val - p, 0.0)
    return mse + penalty * jnp.mean(over ** 2 + under ** 2)


if __name__ == "__main__":
    key = jax.random.PRNGKey(0)

    # Small test consistent with a generic (batch, channels, H, W) input.
    kp, kt, kp2, kt2 = jax.random.split(key, 4)
    preds = jax.random.uniform(kp, (2, 4, 16, 16), jnp.float32,
                               minval=-0.5, maxval=1.5)
    target = jax.random.uniform(kt, (2, 4, 16, 16), jnp.float32)

    loss = jax.block_until_ready(
        bounded_mse_loss(preds, target, min_val=0.0, max_val=1.0, penalty=10.0))
    ref = _reference(preds, target)
    assert jnp.allclose(loss, ref, rtol=2e-5, atol=1e-6), (loss, ref)

    # Second check: non-tile-aligned size -> exercises the in-kernel mask and
    # the (parallel, arbitrary) multi-block path.
    preds2 = jax.random.uniform(kp2, (8, 8, 64, 63), jnp.float32,
                                minval=-0.5, maxval=1.5)
    target2 = jax.random.uniform(kt2, (8, 8, 64, 63), jnp.float32)
    loss2 = jax.block_until_ready(
        bounded_mse_loss(preds2, target2, min_val=0.0, max_val=1.0,
                         penalty=10.0))
    ref2 = _reference(preds2, target2)
    assert jnp.allclose(loss2, ref2, rtol=2e-5, atol=1e-6), (loss2, ref2)

    print("KERNEL_OK")
</pallas_src>

<mosaic_0001>
module attributes {stable_mosaic.version = 11 : i64} {
  func.func @_bounded_mse_kernel(%arg0: i32, %arg1: i32, %arg2: memref<16x128xf32, #tpu.memory_space<vmem>>, %arg3: memref<16x128xf32, #tpu.memory_space<vmem>>, %arg4: memref<1x8x128xf32, #tpu.memory_space<vmem>>, %arg5: memref<1x8x128xf32, #tpu.memory_space<vmem>>, %arg6: memref<16x128xf32, #tpu.memory_space<vmem>>, %arg7: memref<16x128xf32, #tpu.memory_space<vmem>>) attributes {dimension_semantics = [#tpu.dimension_semantics<parallel>, #tpu.dimension_semantics<arbitrary>], iteration_bounds = array<i64: 1, 1>, scalar_prefetch = 0 : i64, scratch_operands = 2 : i64, tpu.core_type = #tpu.core_type<tc>, window_params = [{transform_indices = @transform_0, window_bounds = array<i64: 16, 128>}, {transform_indices = @transform_1, window_bounds = array<i64: 16, 128>}, {transform_indices = @transform_2, window_bounds = array<i64: 1, 8, 128>}, {transform_indices = @transform_3, window_bounds = array<i64: 1, 8, 128>}]} {
    %c0_i32 = arith.constant 0 : i32
    %0 = arith.cmpi eq, %arg1, %c0_i32 : i32
    %1 = arith.extui %0 : i1 to i32
    %c0_i32_0 = arith.constant 0 : i32
    %2 = arith.cmpi ne, %1, %c0_i32_0 : i32
    scf.if %2 {
      %cst_18 = arith.constant 0.000000e+00 : f32
      %43 = vector.broadcast %cst_18 : f32 to vector<16x128xf32>
      %c0_19 = arith.constant 0 : index
      %c0_20 = arith.constant 0 : index
      %44 = vector.load %arg6[%c0_19, %c0_20] : memref<16x128xf32, #tpu.memory_space<vmem>>, vector<16x128xf32>
      tpu.vector_store %arg6[%c0_19, %c0_20], %43 {strides = array<i32>} : memref<16x128xf32, #tpu.memory_space<vmem>>, vector<16x128xf32>,
      %cst_21 = arith.constant 0.000000e+00 : f32
      %45 = vector.broadcast %cst_21 : f32 to vector<16x128xf32>
      %c0_22 = arith.constant 0 : index
      %c0_23 = arith.constant 0 : index
      %46 = vector.load %arg7[%c0_22, %c0_23] : memref<16x128xf32, #tpu.memory_space<vmem>>, vector<16x128xf32>
      tpu.vector_store %arg7[%c0_22, %c0_23], %45 {strides = array<i32>} : memref<16x128xf32, #tpu.memory_space<vmem>>, vector<16x128xf32>,
    } else {
    }
    %c0 = arith.constant 0 : index
    %c0_1 = arith.constant 0 : index
    %3 = vector.load %arg2[%c0, %c0_1] : memref<16x128xf32, #tpu.memory_space<vmem>>, vector<16x128xf32>
    %c0_2 = arith.constant 0 : index
    %c0_3 = arith.constant 0 : index
    %4 = vector.load %arg3[%c0_2, %c0_3] : memref<16x128xf32, #tpu.memory_space<vmem>>, vector<16x128xf32>
    %c1_i32 = arith.constant 1 : i32
    %5 = arith.muli %arg0, %c1_i32 : i32
    %6 = arith.addi %5, %arg1 : i32
    %c2048_i32 = arith.constant 2048 : i32
    %7 = arith.muli %6, %c2048_i32 : i32
    %8 = tpu.iota {dimensions = array<i32: 0>} : vector<16x128xi32>
    %9 = tpu.iota {dimensions = array<i32: 1>} : vector<16x128xi32>
    %c128_i32 = arith.constant 128 : i32
    %10 = vector.broadcast %c128_i32 : i32 to vector<16x128xi32>
    %11 = arith.muli %8, %10 : vector<16x128xi32>
    %12 = vector.broadcast %7 : i32 to vector<16x128xi32>
    %13 = arith.addi %12, %11 : vector<16x128xi32>
    %14 = arith.addi %13, %9 : vector<16x128xi32>
    %c2048_i32_4 = arith.constant 2048 : i32
    %15 = vector.broadcast %c2048_i32_4 : i32 to vector<16x128xi32>
    %16 = arith.cmpi slt, %14, %15 : vector<16x128xi32>
    %17 = arith.extui %16 : vector<16x128xi1> to vector<16x128xi32>
    %18 = arith.sitofp %17 : vector<16x128xi32> to vector<16x128xf32>
    %19 = arith.subf %3, %4 : vector<16x128xf32>
    %cst = arith.constant 1.000000e+00 : f32
    %20 = vector.broadcast %cst : f32 to vector<16x128xf32>
    %21 = arith.subf %3, %20 : vector<16x128xf32>
    %cst_5 = arith.constant 0.000000e+00 : f32
    %22 = vector.broadcast %cst_5 : f32 to vector<16x128xf32>
    %23 = arith.maximumf %21, %22 : vector<16x128xf32>
    %cst_6 = arith.constant 0.000000e+00 : f32
    %24 = vector.broadcast %cst_6 : f32 to vector<16x128xf32>
    %25 = arith.subf %24, %3 : vector<16x128xf32>
    %cst_7 = arith.constant 0.000000e+00 : f32
    %26 = vector.broadcast %cst_7 : f32 to vector<16x128xf32>
    %27 = arith.maximumf %25, %26 : vector<16x128xf32>
    %c0_8 = arith.constant 0 : index
    %c0_9 = arith.constant 0 : index
    %28 = vector.load %arg6[%c0_8, %c0_9] : memref<16x128xf32, #tpu.memory_space<vmem>>, vector<16x128xf32>
    %29 = arith.mulf %19, %19 : vector<16x128xf32>
    %30 = arith.mulf %18, %29 : vector<16x128xf32>
    %31 = arith.addf %28, %30 : vector<16x128xf32>
    %c0_10 = arith.constant 0 : index
    %c0_11 = arith.constant 0 : index
    %32 = vector.load %arg6[%c0_10, %c0_11] : memref<16x128xf32, #tpu.memory_space<vmem>>, vector<16x128xf32>
    tpu.vector_store %arg6[%c0_10, %c0_11], %31 {strides = array<i32>} : memref<16x128xf32, #tpu.memory_space<vmem>>, vector<16x128xf32>,
    %c0_12 = arith.constant 0 : index
    %c0_13 = arith.constant 0 : index
    %33 = vector.load %arg7[%c0_12, %c0_13] : memref<16x128xf32, #tpu.memory_space<vmem>>, vector<16x128xf32>
    %34 = arith.mulf %23, %23 : vector<16x128xf32>
    %35 = arith.mulf %27, %27 : vector<16x128xf32>
    %36 = arith.addf %34, %35 : vector<16x128xf32>
    %37 = arith.mulf %18, %36 : vector<16x128xf32>
    %38 = arith.addf %33, %37 : vector<16x128xf32>
    %c0_14 = arith.constant 0 : index
    %c0_15 = arith.constant 0 : index
    %39 = vector.load %arg7[%c0_14, %c0_15] : memref<16x128xf32, #tpu.memory_space<vmem>>, vector<16x128xf32>
    tpu.vector_store %arg7[%c0_14, %c0_15], %38 {strides = array<i32>} : memref<16x128xf32, #tpu.memory_space<vmem>>, vector<16x128xf32>,
    %c0_i32_16 = arith.constant 0 : i32
    %40 = arith.cmpi eq, %arg1, %c0_i32_16 : i32
    %41 = arith.extui %40 : i1 to i32
    %c0_i32_17 = arith.constant 0 : i32
    %42 = arith.cmpi ne, %41, %c0_i32_17 : i32
    scf.if %42 {
      %c0_18 = arith.constant 0 : index
      %c0_19 = arith.constant 0 : index
      %43 = vector.load %arg6[%c0_18, %c0_19] : memref<16x128xf32, #tpu.memory_space<vmem>>, vector<16x128xf32>
      %44 = vector.shape_cast %43 : vector<16x128xf32> to vector<1x16x128xf32>
      %cst_20 = arith.constant dense<0.000000e+00> : vector<1xf32>
      %45 = vector.multi_reduction <add>, %44, %cst_20 [1, 2] : vector<1x16x128xf32> to vector<1xf32>
      %46 = vector.shape_cast %45 : vector<1xf32> to vector<1x1x1xf32>
      %47 = vector.extract %46[0, 0, 0] : f32 from vector<1x1x1xf32>
      %c0_21 = arith.constant 0 : index
      %c0_22 = arith.constant 0 : index
      %48 = vector.load %arg7[%c0_21, %c0_22] : memref<16x128xf32, #tpu.memory_space<vmem>>, vector<16x128xf32>
      %49 = vector.shape_cast %48 : vector<16x128xf32> to vector<1x16x128xf32>
      %cst_23 = arith.constant dense<0.000000e+00> : vector<1xf32>
      %50 = vector.multi_reduction <add>, %49, %cst_23 [1, 2] : vector<1x16x128xf32> to vector<1xf32>
      %51 = vector.shape_cast %50 : vector<1xf32> to vector<1x1x1xf32>
      %52 = vector.extract %51[0, 0, 0] : f32 from vector<1x1x1xf32>
      %53 = vector.broadcast %47 : f32 to vector<1x8x128xf32>
      %c0_24 = arith.constant 0 : index
      %c0_25 = arith.constant 0 : index
      %c0_26 = arith.constant 0 : index
      %54 = vector.load %arg4[%c0_24, %c0_25, %c0_26] : memref<1x8x128xf32, #tpu.memory_space<vmem>>, vector<1x8x128xf32>
      tpu.vector_store %arg4[%c0_24, %c0_25, %c0_26], %53 {strides = array<i32>} : memref<1x8x128xf32, #tpu.memory_space<vmem>>, vector<1x8x128xf32>,
      %55 = vector.broadcast %52 : f32 to vector<1x8x128xf32>
      %c0_27 = arith.constant 0 : index
      %c0_28 = arith.constant 0 : index
      %c0_29 = arith.constant 0 : index
      %56 = vector.load %arg5[%c0_27, %c0_28, %c0_29] : memref<1x8x128xf32, #tpu.memory_space<vmem>>, vector<1x8x128xf32>
      tpu.vector_store %arg5[%c0_27, %c0_28, %c0_29], %55 {strides = array<i32>} : memref<1x8x128xf32, #tpu.memory_space<vmem>>, vector<1x8x128xf32>,
    } else {
    }
    return
  }
  func.func @transform_0(%arg0: i32, %arg1: i32) -> (i32, i32) {
    %c1_i32 = arith.constant 1 : i32
    %0 = arith.muli %arg0, %c1_i32 : i32
    %1 = arith.addi %0, %arg1 : i32
    %c0_i32 = arith.constant 0 : i32
    %c0_i32_0 = arith.constant 0 : i32
    return %1, %c0_i32 : i32, i32
  }
  func.func @transform_1(%arg0: i32, %arg1: i32) -> (i32, i32) {
    %c1_i32 = arith.constant 1 : i32
    %0 = arith.muli %arg0, %c1_i32 : i32
    %1 = arith.addi %0, %arg1 : i32
    %c0_i32 = arith.constant 0 : i32
    %c0_i32_0 = arith.constant 0 : i32
    return %1, %c0_i32 : i32, i32
  }
  func.func @transform_2(%arg0: i32, %arg1: i32) -> (i32, i32, i32) {
    %c0_i32 = arith.constant 0 : i32
    %c0_i32_0 = arith.constant 0 : i32
    %c0_i32_1 = arith.constant 0 : i32
    return %arg0, %c0_i32, %c0_i32_0 : i32, i32, i32
  }
  func.func @transform_3(%arg0: i32, %arg1: i32) -> (i32, i32, i32) {
    %c0_i32 = arith.constant 0 : i32
    %c0_i32_0 = arith.constant 0 : i32
    %c0_i32_1 = arith.constant 0 : i32
    return %arg0, %c0_i32, %c0_i32_0 : i32, i32, i32
  }
}

</mosaic_0001>

<llo_original>
// kernel: tpu_custom_call.1
$region0: #{tpu_custom_call.1}
  #allocation0 [shape = 'u32[]', space=smem, size = 0x4, offset = 0x4, fixed_abs, tag = 'smem constant byte address 0x4 - core index']
  #allocation1 [shape = 'u32[144,128]{1,0:T(1,128)}', space=vmem, size = 0x12000, scoped, tag = 'internal scratch']
  #allocation2 [shape = 'f32[16,128]{1,0:T(8,128)}', space=vmem, size = 0x2000, scoped, tag = 'scratch operand']
  #allocation3 [shape = 'f32[16,128]{1,0:T(8,128)}', space=vmem, size = 0x2000, scoped, tag = 'scratch operand']
  %s0 = inlined_call_operand.hbm [shape: f32[16,128], index: 0, kind: input, shape index: {}]
  %s1 = inlined_call_operand.hbm [shape: f32[16,128], index: 1, kind: input, shape index: {}]
  %s2 = inlined_call_operand.hbm [shape: f32[1,8,128], index: 2, kind: output, shape index: {0}]
  %s3 = inlined_call_operand.hbm [shape: f32[1,8,128], index: 3, kind: output, shape index: {1}]
  %4 = xla_tuple %s2, %s3
  %s5 = sld [smem:[#allocation0]]
  $region42: #{tpu_custom_call.1} parent=0
    _
  %s7 = ssub.s32 1, %s5
  %s8 = scalar_select 0, %s7, %s5
  $region1: #{tpu_custom_call.1} parent=0
    #allocation4 [shape = 'u8[8192]{0}', space=vmem, size = 0x2000, scoped, tag = 'input window, operand 0, single buffered']
    #allocation5 [shape = 's32[1]{0}', space=sflag, size = 0x4, scoped, tag = 'scoped memory for tpu_custom_call.1']
    #allocation6 [shape = 's32[1]{0}', space=sflag, size = 0x4, scoped, tag = 'scoped memory for tpu_custom_call.1']
    #allocation7 [shape = 'u8[8192]{0}', space=vmem, size = 0x2000, scoped, tag = 'input window, operand 1, single buffered']
    #allocation8 [shape = 's32[1]{0}', space=sflag, size = 0x4, scoped, tag = 'scoped memory for tpu_custom_call.1']
    #allocation9 [shape = 'u8[4096]{0}', space=vmem, size = 0x1000, scoped, tag = 'output window, operand 0, single buffered']
    #allocation10 [shape = 'u8[4096]{0}', space=vmem, size = 0x1000, scoped, tag = 'output window, operand 1, single buffered']
    #allocation11 [shape = 's32[1]{0}', space=sflag, size = 0x4, scoped, tag = 'scoped memory for tpu_custom_call.1']
    %9 = vsyncpa [#allocation5], 0
    %10 = vsyncpa [#allocation8], 0
    %11 = vsyncpa [#allocation6], 0
    %12 = vsyncpa [#allocation11], 0
    // Predicated region
    $region2: #{tpu_custom_call.1} parent=1 // pred_check
      _
    $region3: #{tpu_custom_call.1} parent=1 // pred_check_branch
      %14 = sbr.rel (0) target = $region5
    $region4: #{tpu_custom_call.1} parent=1 // pred_region
      %s15 = sadd.s32 0, 0
      %s16 = smul.u32 2, %s15
      %s18 = ssub.s32 256, 256
      %19 = vsyncadd [#allocation5], %s18
      %s20 = smul.addr %s16, 128
      %s21 = scalar_lea.hbm %s0, %s20
      %s22 = sshll.u32 [#allocation4], 4
      %s23 = int_to_ptr.vmem [resolvable:$true] %s22
      %28 = dma.hbm_to_vmem [thread:$0]  %s21, 256, %s23, [#allocation5], 128, 128, 8
    $region5: #{tpu_custom_call.1} parent=1 // pred_fallthru
      _
    // Predicated region
    $region6: #{tpu_custom_call.1} parent=1 // pred_check
      _
    $region7: #{tpu_custom_call.1} parent=1 // pred_check_branch
      %30 = sbr.rel (0) target = $region9
    $region8: #{tpu_custom_call.1} parent=1 // pred_region
      %s31 = sadd.s32 0, 0
      %s32 = smul.u32 2, %s31
      %s34 = ssub.s32 256, 256
      %35 = vsyncadd [#allocation8], %s34
      %s36 = smul.addr %s32, 128
      %s37 = scalar_lea.hbm %s1, %s36
      %s38 = sshll.u32 [#allocation7], 4
      %s39 = int_to_ptr.vmem [resolvable:$true] %s38
      %44 = dma.hbm_to_vmem [thread:$0]  %s37, 256, %s39, [#allocation8], 128, 128, 8
    $region9: #{tpu_custom_call.1} parent=1 // pred_fallthru
      _
    // Predicated region
    $region10: #{tpu_custom_call.1} parent=1 // pred_check
      _
    $region11: #{tpu_custom_call.1} parent=1 // pred_check_branch
      %46 = sbr.rel (0) target = $region13
    $region12: #{tpu_custom_call.1} parent=1 // pred_region
      %47 = dma.done [#allocation5], 256
    $region13: #{tpu_custom_call.1} parent=1 // pred_fallthru
      _
    // Predicated region
    $region14: #{tpu_custom_call.1} parent=1 // pred_check
      _
    $region15: #{tpu_custom_call.1} parent=1 // pred_check_branch
      %49 = sbr.rel (0) target = $region17
    $region16: #{tpu_custom_call.1} parent=1 // pred_region
      %50 = dma.done [#allocation8], 256
    $region17: #{tpu_custom_call.1} parent=1 // pred_fallthru
      _
    %s51 = sadd.s32 0, 0
    %s52 = smul.u32 2, %s51
    %s53 = sadd.s32 0, 0
    %s54 = smul.u32 2, %s53
    %p55 = scmp.eq.s32.totalorder 0, 0
    // Predicated region
    $region18: #{tpu_custom_call.1} parent=1 // pred_check
      %p56 = pneg %p55
    $region19: #{tpu_custom_call.1} parent=1 // pred_check_branch
      %58 = sbr.rel (%p56) target = $region21
    $region20: #{tpu_custom_call.1} parent=1 // pred_region
      %59 = vst [vmem:[#allocation2] sm:$0xff] 0.0
      %60 = vst [vmem:[#allocation2 + $0x8] sm:$0xff] 0.0
      %61 = vst [vmem:[#allocation3] sm:$0xff] 0.0
      %62 = vst [vmem:[#allocation3 + $0x8] sm:$0xff] 0.0
    $region21: #{tpu_custom_call.1} parent=1 // pred_fallthru
      _
    %v63 = vld [vmem:[#allocation4] sm:$0xff]
    %v64 = vld [vmem:[#allocation4 + $0x8] sm:$0xff]
    %v65 = vld [vmem:[#allocation7] sm:$0xff]
    %v66 = vld [vmem:[#allocation7 + $0x8] sm:$0xff]
    %s67 = sadd.s32 0, 0
    %s68 = smul.u32 %s67, 2048
    %v69 = vlaneseq
    %v70 = vshrl.u32 %v69, 7
    %v71 = vadd.s32 %v70, 8
    %v72 = vlaneseq
    %v73 = vand.u32 %v72, 127
    %v74 = vmul.u32 %v70, 128
    %v75 = vmul.u32 %v71, 128
    %v76 = vstv %s68
    %v77 = vadd.s32 %v76, %v74
    %v78 = vadd.s32 %v76, %v75
    %v79 = vadd.s32 %v77, %v73
    %v80 = vadd.s32 %v78, %v73
    %vm81 = vcmp.lt.s32.totalorder %v79, 2048
    %vm82 = vcmp.lt.s32.totalorder %v80, 2048
    %v83 = vsel %vm81, 1, 0
    %v84 = vsel %vm82, 1, 0
    %v85 = vcvt.s32.f32 %v83
    %v86 = vcvt.s32.f32 %v84
    %v87 = vsub.f32 %v63, %v65
    %v88 = vsub.f32 %v64, %v66
    %v89 = vsub.f32 %v63, 1.0
    %v90 = vsub.f32 %v64, 1.0
    %v91 = vmax.f32 %v89, 0.0
    %v92 = vmax.f32 %v90, 0.0
    %v93 = vsub.f32 0.0, %v63
    %v94 = vsub.f32 0.0, %v64
    %v95 = vmax.f32 %v93, 0.0
    %v96 = vmax.f32 %v94, 0.0
    %v97 = vld [vmem:[#allocation2] sm:$0xff]
    %v98 = vld [vmem:[#allocation2 + $0x8] sm:$0xff]
    %v99 = vmul.f32 %v87, %v87
    %v100 = vmul.f32 %v88, %v88
    %v101 = vmul.f32 %v85, %v99
    %v102 = vmul.f32 %v86, %v100
    %v103 = vadd.f32 %v97, %v101
    %v104 = vadd.f32 %v98, %v102
    %105 = vst [vmem:[#allocation2] sm:$0xff] %v103
    %106 = vst [vmem:[#allocation2 + $0x8] sm:$0xff] %v104
    %v107 = vld [vmem:[#allocation3] sm:$0xff]
    %v108 = vld [vmem:[#allocation3 + $0x8] sm:$0xff]
    %v109 = vmul.f32 %v91, %v91
    %v110 = vmul.f32 %v92, %v92
    %v111 = vmul.f32 %v95, %v95
    %v112 = vmul.f32 %v96, %v96
    %v113 = vadd.f32 %v109, %v111
    %v114 = vadd.f32 %v110, %v112
    %v115 = vmul.f32 %v85, %v113
    %v116 = vmul.f32 %v86, %v114
    %v117 = vadd.f32 %v107, %v115
    %v118 = vadd.f32 %v108, %v116
    %119 = vst [vmem:[#allocation3] sm:$0xff] %v117
    %120 = vst [vmem:[#allocation3 + $0x8] sm:$0xff] %v118
    // Predicated region
    $region22: #{tpu_custom_call.1} parent=1 // pred_check
      %p121 = pneg %p55
    $region23: #{tpu_custom_call.1} parent=1 // pred_check_branch
      %123 = sbr.rel (%p121) target = $region25
    $region24: #{tpu_custom_call.1} parent=1 // pred_region
      %v124 = vld [vmem:[#allocation2] sm:$0xff]
      %v125 = vld [vmem:[#allocation2 + $0x8] sm:$0xff]
      %v126 = vadd.f32 %v124, %v125
      %127 = vadd.xlane.f32.xlu0 %v126
      %v128 = vpop.xlane.xlu0 %127
      %v129 = vrot.slane %v128, 4
      %v130 = vadd.f32 %v128, %v129
      %v131 = vrot.slane %v130, 2
      %v132 = vadd.f32 %v130, %v131
      %v133 = vrot.slane %v132, 1
      %v134 = vadd.f32 %v132, %v133
      %s135 = vtos %v134
      %v136 = vld [vmem:[#allocation3] sm:$0xff]
      %v137 = vld [vmem:[#allocation3 + $0x8] sm:$0xff]
      %v138 = vadd.f32 %v136, %v137
      %139 = vadd.xlane.f32.xlu0 %v138
      %v140 = vpop.xlane.xlu0 %139
      %v141 = vrot.slane %v140, 4
      %v142 = vadd.f32 %v140, %v141
      %v143 = vrot.slane %v142, 2
      %v144 = vadd.f32 %v142, %v143
      %v145 = vrot.slane %v144, 1
      %v146 = vadd.f32 %v144, %v145
      %s147 = vtos %v146
      %v148 = vstv %s135
      %149 = vst [vmem:[#allocation9] sm:$0xff] %v148
      %v150 = vstv %s147
      %151 = vst [vmem:[#allocation10] sm:$0xff] %v150
    $region25: #{tpu_custom_call.1} parent=1 // pred_fallthru
      _
    // Predicated region
    $region26: #{tpu_custom_call.1} parent=1 // pred_check
      _
    $region27: #{tpu_custom_call.1} parent=1 // pred_check_branch
      %153 = sbr.rel (0) target = $region29
    $region28: #{tpu_custom_call.1} parent=1 // pred_region
      %s155 = ssub.s32 128, 128
      %156 = vsyncadd [#allocation6], %s155
      %s158 = sshll.u32 [#allocation9], 4
      %s159 = int_to_ptr.vmem [resolvable:$true] %s158
      %161 = dma.vmem_to_hbm [thread:$0]  %s159, 128, %s2, [#allocation6]
    $region29: #{tpu_custom_call.1} parent=1 // pred_fallthru
      _
    // Predicated region
    $region30: #{tpu_custom_call.1} parent=1 // pred_check
      _
    $region31: #{tpu_custom_call.1} parent=1 // pred_check_branch
      %163 = sbr.rel (0) target = $region33
    $region32: #{tpu_custom_call.1} parent=1 // pred_region
      %s165 = ssub.s32 128, 128
      %166 = vsyncadd [#allocation11], %s165
      %s168 = sshll.u32 [#allocation10], 4
      %s169 = int_to_ptr.vmem [resolvable:$true] %s168
      %171 = dma.vmem_to_hbm [thread:$0]  %s169, 128, %s3, [#allocation11]
    $region33: #{tpu_custom_call.1} parent=1 // pred_fallthru
      _
    // Predicated region
    $region34: #{tpu_custom_call.1} parent=1 // pred_check
      _
    $region35: #{tpu_custom_call.1} parent=1 // pred_check_branch
      %173 = sbr.rel (0) target = $region37
    $region36: #{tpu_custom_call.1} parent=1 // pred_region
      %174 = dma.done [#allocation6], 128
    $region37: #{tpu_custom_call.1} parent=1 // pred_fallthru
      _
    // Predicated region
    $region38: #{tpu_custom_call.1} parent=1 // pred_check
      _
    $region39: #{tpu_custom_call.1} parent=1 // pred_check_branch
      %176 = sbr.rel (0) target = $region41
    $region40: #{tpu_custom_call.1} parent=1 // pred_region
      %177 = dma.done [#allocation11], 128
    $region41: #{tpu_custom_call.1} parent=1 // pred_fallthru
      _
    %178 = vsyncpa [#allocation5], 1
    %179 = vsyncpa [#allocation8], 1
    %180 = vsyncpa [#allocation6], 1
    %181 = vsyncpa [#allocation11], 1

</llo_original>
